<compile_context>
chip_gen: v6e
topology: v6e:2x2x1
jax: 0.10.0
libtpu: 0.0.40
codegen_flags: <defaults>
</compile_context>

<pallas_src>
import functools

import jax
import jax.numpy as jnp
from jax.experimental import pallas as pl
from jax.experimental.pallas import tpu as pltpu

_NEG_LARGE = -1e30  # acts as -inf for f32 softmax masking (exp underflows to 0)


def _attention_gated_kernel(x_ref, w_ref, b_ref, ww_ref, bw_ref, out_ref,
                            *, n_valid, d):
    i = pl.program_id(0)
    n_tiles = pl.num_programs(0)
    tn = x_ref.shape[0]
    k_dim = ww_ref.shape[0]

    # In-kernel bf16 cast of the x tile (VPU) feeds the MXU; f32 accumulation.
    x_bf = x_ref[...].astype(jnp.bfloat16)
    h = jnp.dot(x_bf, w_ref[...], preferred_element_type=jnp.float32)  # (tn, 2D)
    h = h + b_ref[...]                                                 # f32 bias add

    a_v = jnp.tanh(h[:, :d])                                           # (tn, D)
    # sigmoid(z) = 0.5*(tanh(0.5*z)+1): single EUP push instead of exp + recip.
    a_u = 0.5 * (jnp.tanh(0.5 * h[:, d:]) + 1.0)                       # (tn, D)
    gated = a_v * a_u                                                  # (tn, D) f32

    # Attention scores: K is tiny (default 1) -> VPU broadcast-multiply plus an
    # XLU lane reduction instead of a near-empty MXU pass.  bw from SMEM.
    rows = []
    for k in range(k_dim):                                             # static tiny loop
        wk = ww_ref[k:k + 1, :]                                        # (1, D) f32
        r = jnp.sum(gated * wk, axis=1) + bw_ref[k]                    # (tn,)
        rows.append(r.reshape(1, tn))
    scores_t = rows[0] if k_dim == 1 else jnp.concatenate(rows, axis=0)  # (K, tn)

    # Mask padded / out-of-bag instances BEFORE storing, so undefined data from
    # the ragged last x tile can never reach the softmax.
    off = pl.multiple_of(i * tn, 128)
    lane = jax.lax.broadcasted_iota(jnp.int32, (1, tn), 1)
    scores_t = jnp.where(off + lane < n_valid, scores_t, _NEG_LARGE)

    # out_ref is the full (K, N_pad) score row, resident in VMEM across the grid
    # (constant output index map).  Lane-dense, 128-aligned dynamic store.
    out_ref[:, pl.ds(off, tn)] = scores_t

    # Numerically stable softmax over all instances, once, on the last tile.
    @pl.when(i == n_tiles - 1)
    def _finalize():
        s = out_ref[...]                                               # (K, N_pad) f32
        m = jnp.max(s, axis=1, keepdims=True)
        e = jnp.exp(s - m)
        out_ref[...] = e / jnp.sum(e, axis=1, keepdims=True)


def attention_gated(x, wv, bv, wu, bu, ww, bw, *, tile_n=2048):
    """Forward pass of Attention_Gated.

    x: (N, L) f32 (or bf16); wv/wu: (L, D) (pre-transposed vs PyTorch);
    bv/bu: (D,); ww: (D, K); bw: (K,).  Returns softmax attention (K, N) f32.
    """
    N, L = x.shape
    D = wv.shape[1]
    K = ww.shape[1]
    assert tile_n % 128 == 0

    # Host-side packing of the (tiny, grid-invariant) parameters only:
    # fused (L, 2D) bf16 weight, (1, 2D) f32 bias, (K, D) f32 score weights,
    # (K,) f32 score bias (SMEM).  x itself is NOT padded or cast on the host.
    w_fused = jnp.concatenate([wv, wu], axis=1).astype(jnp.bfloat16)       # (L, 2D)
    b_fused = jnp.concatenate([bv, bu]).reshape(1, 2 * D).astype(jnp.float32)
    ww_rows = ww.T.astype(jnp.float32)                                     # (K, D)
    bw_s = bw.reshape(K).astype(jnp.float32)

    # Lane-dense tile over N; the ragged last tile is masked inside the kernel.
    n_pad_min = ((N + 127) // 128) * 128
    tn = min(tile_n, n_pad_min)
    n_tiles = (N + tn - 1) // tn
    n_pad = n_tiles * tn

    kernel = functools.partial(_attention_gated_kernel, n_valid=N, d=D)

    out = pl.pallas_call(
        kernel,
        out_shape=jax.ShapeDtypeStruct((K, n_pad), jnp.float32),
        grid=(n_tiles,),
        in_specs=[
            pl.BlockSpec((tn, L), lambda i: (i, 0)),             # x tile (in-kernel bf16 cast)
            pl.BlockSpec((L, 2 * D), lambda i: (0, 0)),          # fused weight (bf16)
            pl.BlockSpec((1, 2 * D), lambda i: (0, 0)),          # fused bias (f32)
            pl.BlockSpec((K, D), lambda i: (0, 0)),              # score weights (f32)
            pl.BlockSpec(memory_space=pltpu.MemorySpace.SMEM),   # bw scalar(s)
        ],
        out_specs=pl.BlockSpec((K, n_pad), lambda i: (0, 0)),
        compiler_params=pltpu.CompilerParams(
            # The N axis is a softmax reduction (resident output) -> arbitrary.
            dimension_semantics=("arbitrary",),
            # Room for the 2048-row f32 x double-buffer + f32 temps on every chip
            # (within v5e/v6e 128 MiB and v7x 64 MiB physical VMEM).
            vmem_limit_bytes=32 * 1024 * 1024,
        ),
    )(x, w_fused, b_fused, ww_rows, bw_s)
    return out[:, :N]


def attention_gated_ref(x, wv, bv, wu, bu, ww, bw):
    a_v = jnp.tanh(x @ wv + bv)
    a_u = jax.nn.sigmoid(x @ wu + bu)
    a = (a_v * a_u) @ ww + bw
    return jax.nn.softmax(a.T, axis=1)


if __name__ == "__main__":
    # Module defaults: L=512, D=128, K=1; small bag of N instances.
    N, L, D, K = 8, 512, 128, 1

    key = jax.random.PRNGKey(0)
    kx, kwv, kbv, kwu, kbu, kww, kbw = jax.random.split(key, 7)

    x = jax.random.normal(kx, (N, L), dtype=jnp.float32)

    sl = 1.0 / jnp.sqrt(jnp.float32(L))
    sd = 1.0 / jnp.sqrt(jnp.float32(D))
    wv = jax.random.uniform(kwv, (L, D), jnp.float32, -sl, sl)
    bv = jax.random.uniform(kbv, (D,), jnp.float32, -sl, sl)
    wu = jax.random.uniform(kwu, (L, D), jnp.float32, -sl, sl)
    bu = jax.random.uniform(kbu, (D,), jnp.float32, -sl, sl)
    ww = jax.random.uniform(kww, (D, K), jnp.float32, -sd, sd)
    bw = jax.random.uniform(kbw, (K,), jnp.float32, -sd, sd)

    out = jax.block_until_ready(attention_gated(x, wv, bv, wu, bu, ww, bw))
    ref = attention_gated_ref(x, wv, bv, wu, bu, ww, bw)

    assert out.shape == (K, N), out.shape
    # bf16 MXU inputs -> compare to the f32 reference with a modest tolerance.
    assert jnp.allclose(out, ref, rtol=2e-2, atol=2e-2), (out, ref)
    assert jnp.allclose(jnp.sum(out, axis=1), 1.0, atol=1e-5)

    print("KERNEL_OK")
</pallas_src>

<mosaic_0001>
module attributes {stable_mosaic.version = 11 : i64} {
  func.func @_attention_gated_kernel(%arg0: i32, %arg1: memref<128x512xf32, #tpu.memory_space<vmem>>, %arg2: memref<512x256xbf16, #tpu.memory_space<vmem>>, %arg3: memref<1x256xf32, #tpu.memory_space<vmem>>, %arg4: memref<1x128xf32, #tpu.memory_space<vmem>>, %arg5: memref<1xf32, #tpu.memory_space<smem>>, %arg6: memref<1x128xf32, #tpu.memory_space<vmem>>) attributes {dimension_semantics = [#tpu.dimension_semantics<arbitrary>], iteration_bounds = array<i64: 1>, scalar_prefetch = 0 : i64, scratch_operands = 0 : i64, tpu.core_type = #tpu.core_type<tc>, window_params = [{transform_indices = @transform_0, window_bounds = array<i64: 128, 512>}, {pipeline_mode = #tpu.pipeline_mode<synchronous>, transform_indices = @transform_1, window_bounds = array<i64: 512, 256>}, {pipeline_mode = #tpu.pipeline_mode<synchronous>, transform_indices = @transform_2, window_bounds = array<i64: 1, 256>}, {pipeline_mode = #tpu.pipeline_mode<synchronous>, transform_indices = @transform_3, window_bounds = array<i64: 1, 128>}, {transform_indices = @transform_4, window_bounds = array<i64: 1>}, {pipeline_mode = #tpu.pipeline_mode<synchronous>, transform_indices = @transform_5, window_bounds = array<i64: 1, 128>}]} {
    %c0 = arith.constant 0 : index
    %c0_0 = arith.constant 0 : index
    %0 = vector.load %arg1[%c0, %c0_0] : memref<128x512xf32, #tpu.memory_space<vmem>>, vector<128x512xf32>
    %1 = arith.truncf %0 : vector<128x512xf32> to vector<128x512xbf16>
    %c0_1 = arith.constant 0 : index
    %c0_2 = arith.constant 0 : index
    %2 = vector.load %arg2[%c0_1, %c0_2] : memref<512x256xbf16, #tpu.memory_space<vmem>>, vector<512x256xbf16>
    %cst = arith.constant dense<0.000000e+00> : vector<128x256xf32>
    %3 = tpu.matmul %1, %2, %cst {dimension_numbers = #tpu.dot_dimension_numbers<[1], [0], [0], [1], [0, 0, 1, 1], [], []>} : vector<128x512xbf16>, vector<512x256xbf16>, vector<128x256xf32> -> vector<128x256xf32>
    %c0_3 = arith.constant 0 : index
    %c0_4 = arith.constant 0 : index
    %4 = vector.load %arg3[%c0_3, %c0_4] : memref<1x256xf32, #tpu.memory_space<vmem>>, vector<1x256xf32>
    %5 = vector.broadcast %4 : vector<1x256xf32> to vector<128x256xf32>
    %6 = arith.addf %3, %5 : vector<128x256xf32>
    %7 = vector.extract_strided_slice %6 {offsets = [0, 0], sizes = [128, 128], strides = [1, 1]} : vector<128x256xf32> to vector<128x128xf32>
    %8 = math.tanh %7 : vector<128x128xf32>
    %9 = vector.extract_strided_slice %6 {offsets = [0, 128], sizes = [128, 128], strides = [1, 1]} : vector<128x256xf32> to vector<128x128xf32>
    %cst_5 = arith.constant 5.000000e-01 : f32
    %10 = vector.broadcast %cst_5 : f32 to vector<128x128xf32>
    %11 = arith.mulf %10, %9 : vector<128x128xf32>
    %12 = math.tanh %11 : vector<128x128xf32>
    %cst_6 = arith.constant 1.000000e+00 : f32
    %13 = vector.broadcast %cst_6 : f32 to vector<128x128xf32>
    %14 = arith.addf %12, %13 : vector<128x128xf32>
    %cst_7 = arith.constant 5.000000e-01 : f32
    %15 = vector.broadcast %cst_7 : f32 to vector<128x128xf32>
    %16 = arith.mulf %15, %14 : vector<128x128xf32>
    %17 = arith.mulf %8, %16 : vector<128x128xf32>
    %c0_8 = arith.constant 0 : index
    %c0_9 = arith.constant 0 : index
    %18 = vector.load %arg4[%c0_8, %c0_9] : memref<1x128xf32, #tpu.memory_space<vmem>>, vector<1x128xf32>
    %19 = vector.broadcast %18 : vector<1x128xf32> to vector<128x128xf32>
    %20 = arith.mulf %17, %19 : vector<128x128xf32>
    %cst_10 = arith.constant dense<0.000000e+00> : vector<128xf32>
    %21 = vector.multi_reduction <add>, %20, %cst_10 [1] : vector<128x128xf32> to vector<128xf32>
    %c0_11 = arith.constant 0 : index
    %22 = memref.load %arg5[%c0_11] : memref<1xf32, #tpu.memory_space<smem>>
    %23 = vector.broadcast %22 : f32 to vector<128xf32>
    %24 = arith.addf %21, %23 : vector<128xf32>
    %25 = vector.shape_cast %24 : vector<128xf32> to vector<1x128xf32>
    %c128_i32 = arith.constant 128 : i32
    %26 = arith.muli %arg0, %c128_i32 : i32
    %27 = tpu.assume_multiple %26, 128 : i32
    %28 = tpu.iota {dimensions = array<i32: 1>} : vector<1x128xi32>
    %29 = vector.broadcast %27 : i32 to vector<1x128xi32>
    %30 = arith.addi %29, %28 : vector<1x128xi32>
    %c8_i32 = arith.constant 8 : i32
    %31 = vector.broadcast %c8_i32 : i32 to vector<1x128xi32>
    %32 = arith.cmpi slt, %30, %31 : vector<1x128xi32>
    %cst_12 = arith.constant -1.000000e+30 : f32
    %33 = vector.broadcast %cst_12 : f32 to vector<1x128xf32>
    %34 = arith.select %32, %25, %33 : vector<1x128xi1>, vector<1x128xf32>
    %c0_13 = arith.constant 0 : index
    %35 = arith.index_cast %27 : i32 to index
    %36 = vector.load %arg6[%c0_13, %35] : memref<1x128xf32, #tpu.memory_space<vmem>>, vector<1x128xf32>
    tpu.vector_store %arg6[%c0_13, %35], %34 {strides = array<i32>} : memref<1x128xf32, #tpu.memory_space<vmem>>, vector<1x128xf32>,
    %c0_i32 = arith.constant 0 : i32
    %37 = arith.cmpi eq, %arg0, %c0_i32 : i32
    %38 = arith.extui %37 : i1 to i32
    %c0_i32_14 = arith.constant 0 : i32
    %39 = arith.cmpi ne, %38, %c0_i32_14 : i32
    scf.if %39 {
      %c0_15 = arith.constant 0 : index
      %c0_16 = arith.constant 0 : index
      %40 = vector.load %arg6[%c0_15, %c0_16] : memref<1x128xf32, #tpu.memory_space<vmem>>, vector<1x128xf32>
      %cst_17 = arith.constant dense<0xFF800000> : vector<1xf32>
      %41 = vector.multi_reduction <maximumf>, %40, %cst_17 [1] : vector<1x128xf32> to vector<1xf32>
      %42 = vector.shape_cast %41 : vector<1xf32> to vector<1x1xf32>
      %43 = vector.broadcast %42 : vector<1x1xf32> to vector<1x128xf32>
      %44 = arith.subf %40, %43 : vector<1x128xf32>
      %45 = math.exp %44 : vector<1x128xf32>
      %cst_18 = arith.constant dense<0.000000e+00> : vector<1xf32>
      %46 = vector.multi_reduction <add>, %45, %cst_18 [1] : vector<1x128xf32> to vector<1xf32>
      %47 = vector.shape_cast %46 : vector<1xf32> to vector<1x1xf32>
      %48 = vector.broadcast %47 : vector<1x1xf32> to vector<1x128xf32>
      %49 = arith.divf %45, %48 : vector<1x128xf32>
      %c0_19 = arith.constant 0 : index
      %c0_20 = arith.constant 0 : index
      %50 = vector.load %arg6[%c0_19, %c0_20] : memref<1x128xf32, #tpu.memory_space<vmem>>, vector<1x128xf32>
      tpu.vector_store %arg6[%c0_19, %c0_20], %49 {strides = array<i32>} : memref<1x128xf32, #tpu.memory_space<vmem>>, vector<1x128xf32>,
    } else {
    }
    return
  }
  func.func @transform_0(%arg0: i32) -> (i32, i32) {
    %c0_i32 = arith.constant 0 : i32
    %c0_i32_0 = arith.constant 0 : i32
    return %arg0, %c0_i32 : i32, i32
  }
  func.func @transform_1(%arg0: i32) -> (i32, i32) {
    %c0_i32 = arith.constant 0 : i32
    %c0_i32_0 = arith.constant 0 : i32
    %c0_i32_1 = arith.constant 0 : i32
    return %c0_i32, %c0_i32_0 : i32, i32
  }
  func.func @transform_2(%arg0: i32) -> (i32, i32) {
    %c0_i32 = arith.constant 0 : i32
    %c0_i32_0 = arith.constant 0 : i32
    %c0_i32_1 = arith.constant 0 : i32
    return %c0_i32, %c0_i32_0 : i32, i32
  }
  func.func @transform_3(%arg0: i32) -> (i32, i32) {
    %c0_i32 = arith.constant 0 : i32
    %c0_i32_0 = arith.constant 0 : i32
    %c0_i32_1 = arith.constant 0 : i32
    return %c0_i32, %c0_i32_0 : i32, i32
  }
  func.func @transform_4(%arg0: i32) -> i32 {
    %c0_i32 = arith.constant 0 : i32
    %c0_i32_0 = arith.constant 0 : i32
    return %c0_i32 : i32
  }
  func.func @transform_5(%arg0: i32) -> (i32, i32) {
    %c0_i32 = arith.constant 0 : i32
    %c0_i32_0 = arith.constant 0 : i32
    %c0_i32_1 = arith.constant 0 : i32
    return %c0_i32, %c0_i32_0 : i32, i32
  }
}

</mosaic_0001>

<llo_original>
// kernel: tpu_custom_call.1
$region0: #{tpu_custom_call.1}
  #allocation0 [shape = 'u32[]', space=smem, size = 0x4, offset = 0x4, fixed_abs, tag = 'smem constant byte address 0x4 - core index']
  #allocation1 [shape = 'u32[144,128]{1,0:T(1,128)}', space=vmem, size = 0x12000, scoped, tag = 'internal scratch']
  #allocation2 [shape = 'f32[1]{0:T(128)S(6)}', space=smem, size = 0x200, scoped, tag = 'scoped memory for tpu_custom_call.1']
  %s0 = inlined_call_operand.hbm [shape: f32[8,512], index: 0, kind: input, shape index: {}]
  %s1 = inlined_call_operand.hbm [shape: bf16[512,256], index: 1, kind: input, shape index: {}]
  %s2 = inlined_call_operand.vmem [shape: f32[1,256], index: 2, kind: input, shape index: {}]
  %s3 = inlined_call_operand.vmem [shape: f32[1,128], index: 3, kind: input, shape index: {}]
  %s4 = inlined_call_operand.<no memory space> [shape: f32[1], index: 4, kind: input, shape index: {}]
  %s5 = inlined_call_operand.hbm [shape: f32[1,128], index: 5, kind: output, shape index: {}]
  %s6 = sld [smem:[#allocation0]]
  $region42: #{tpu_custom_call.1} parent=0
    _
  %s8 = ssub.s32 1, %s6
  %s9 = scalar_select 0, %s8, %s6
  %10 = sst [smem:[#allocation2]] %s4
  $region1: #{tpu_custom_call.1} parent=0
    #allocation3 [shape = 'u8[262144]{0}', space=vmem, size = 0x40000, scoped, tag = 'input window, operand 0, single buffered']
    #allocation4 [shape = 's32[1]{0}', space=sflag, size = 0x4, scoped, tag = 'scoped memory for tpu_custom_call.1']
    #allocation5 [shape = 's32[1]{0}', space=sflag, size = 0x4, scoped, tag = 'scoped memory for tpu_custom_call.1']
    #allocation6 [shape = 'u8[262144]{0}', space=vmem, size = 0x40000, scoped, tag = 'input window, operand 1, single buffered']
    #allocation7 [shape = 's32[1]{0}', space=sflag, size = 0x4, scoped, tag = 'scoped memory for tpu_custom_call.1']
    #allocation8 [shape = 'u8[512]{0}', space=vmem, size = 0x400, scoped, tag = 'output window, operand 0, single buffered']
    %11 = vsyncpa [#allocation4], 0
    %12 = vsyncpa [#allocation7], 0
    %13 = vsyncpa [#allocation5], 0
    // Predicated region
    $region2: #{tpu_custom_call.1} parent=1 // pred_check
      _
    $region3: #{tpu_custom_call.1} parent=1 // pred_check_branch
      %15 = sbr.rel (0) target = $region5
    $region4: #{tpu_custom_call.1} parent=1 // pred_region
      %s17 = ssub.s32 8192, 512
      %18 = vsyncadd [#allocation4], %s17
      %s19 = sshll.u32 [#allocation3], 4
      %s20 = int_to_ptr.vmem [resolvable:$true] %s19
      %25 = dma.hbm_to_vmem [thread:$0]  %s0, 512, %s20, [#allocation4], 512, 512, 32
    $region5: #{tpu_custom_call.1} parent=1 // pred_fallthru
      _
    // Predicated region
    $region6: #{tpu_custom_call.1} parent=1 // pred_check
      _
    $region7: #{tpu_custom_call.1} parent=1 // pred_check_branch
      %27 = sbr.rel (0) target = $region9
    $region8: #{tpu_custom_call.1} parent=1 // pred_region
      %s29 = ssub.s32 8192, 8192
      %30 = vsyncadd [#allocation7], %s29
      %s31 = sshll.u32 [#allocation6], 4
      %s32 = int_to_ptr.vmem [resolvable:$true] %s31
      %37 = dma.hbm_to_vmem [thread:$0]  %s1, 8192, %s32, [#allocation7], 128, 128, 8
    $region9: #{tpu_custom_call.1} parent=1 // pred_fallthru
      _
    // Predicated region
    $region10: #{tpu_custom_call.1} parent=1 // pred_check
      _
    $region11: #{tpu_custom_call.1} parent=1 // pred_check_branch
      %39 = sbr.rel (0) target = $region13
    $region12: #{tpu_custom_call.1} parent=1 // pred_region
      _
    $region13: #{tpu_custom_call.1} parent=1 // pred_fallthru
      _
    // Predicated region
    $region14: #{tpu_custom_call.1} parent=1 // pred_check
      _
    $region15: #{tpu_custom_call.1} parent=1 // pred_check_branch
      %41 = sbr.rel (0) target = $region17
    $region16: #{tpu_custom_call.1} parent=1 // pred_region
      _
    $region17: #{tpu_custom_call.1} parent=1 // pred_fallthru
      _
    // Predicated region
    $region18: #{tpu_custom_call.1} parent=1 // pred_check
      _
    $region19: #{tpu_custom_call.1} parent=1 // pred_check_branch
      %43 = sbr.rel (0) target = $region21
    $region20: #{tpu_custom_call.1} parent=1 // pred_region
      _
    $region21: #{tpu_custom_call.1} parent=1 // pred_fallthru
      _
    // Predicated region
    $region22: #{tpu_custom_call.1} parent=1 // pred_check
      _
    $region23: #{tpu_custom_call.1} parent=1 // pred_check_branch
      %45 = sbr.rel (0) target = $region25
    $region24: #{tpu_custom_call.1} parent=1 // pred_region
      %46 = dma.done [#allocation4], 8192
    $region25: #{tpu_custom_call.1} parent=1 // pred_fallthru
      _
    // Predicated region
    $region26: #{tpu_custom_call.1} parent=1 // pred_check
      _
    $region27: #{tpu_custom_call.1} parent=1 // pred_check_branch
      %48 = sbr.rel (0) target = $region29
    $region28: #{tpu_custom_call.1} parent=1 // pred_region
      %49 = dma.done [#allocation7], 8192
    $region29: #{tpu_custom_call.1} parent=1 // pred_fallthru
      _
    %v50 = vld [vmem:[#allocation3] sm:$0xff]
    %v51 = vld [vmem:[#allocation3 + $0x8] sm:$0xff]
    %v52 = vld [vmem:[#allocation3 + $0x10] sm:$0xff]
    %v53 = vld [vmem:[#allocation3 + $0x18] sm:$0xff]
    %v54 = vld [vmem:[#allocation3 + $0x20] sm:$0xff]
    %v55 = vld [vmem:[#allocation3 + $0x28] sm:$0xff]
    %v56 = vld [vmem:[#allocation3 + $0x30] sm:$0xff]
    %v57 = vld [vmem:[#allocation3 + $0x38] sm:$0xff]
    %v58 = vld [vmem:[#allocation3 + $0x40] sm:$0xff]
    %v59 = vld [vmem:[#allocation3 + $0x48] sm:$0xff]
    %v60 = vld [vmem:[#allocation3 + $0x50] sm:$0xff]
    %v61 = vld [vmem:[#allocation3 + $0x58] sm:$0xff]
    %v62 = vld [vmem:[#allocation3 + $0x60] sm:$0xff]
    %v63 = vld [vmem:[#allocation3 + $0x68] sm:$0xff]
    %v64 = vld [vmem:[#allocation3 + $0x70] sm:$0xff]
    %v65 = vld [vmem:[#allocation3 + $0x78] sm:$0xff]
    %v66 = vld [vmem:[#allocation3 + $0x80] sm:$0xff]
    %v67 = vld [vmem:[#allocation3 + $0x88] sm:$0xff]
    %v68 = vld [vmem:[#allocation3 + $0x90] sm:$0xff]
    %v69 = vld [vmem:[#allocation3 + $0x98] sm:$0xff]
    %v70 = vld [vmem:[#allocation3 + $0xa0] sm:$0xff]
    %v71 = vld [vmem:[#allocation3 + $0xa8] sm:$0xff]
    %v72 = vld [vmem:[#allocation3 + $0xb0] sm:$0xff]
    %v73 = vld [vmem:[#allocation3 + $0xb8] sm:$0xff]
    %v74 = vld [vmem:[#allocation3 + $0xc0] sm:$0xff]
    %v75 = vld [vmem:[#allocation3 + $0xc8] sm:$0xff]
    %v76 = vld [vmem:[#allocation3 + $0xd0] sm:$0xff]
    %v77 = vld [vmem:[#allocation3 + $0xd8] sm:$0xff]
    %v78 = vld [vmem:[#allocation3 + $0xe0] sm:$0xff]
    %v79 = vld [vmem:[#allocation3 + $0xe8] sm:$0xff]
    %v80 = vld [vmem:[#allocation3 + $0xf0] sm:$0xff]
    %v81 = vld [vmem:[#allocation3 + $0xf8] sm:$0xff]
    %v82 = vld [vmem:[#allocation3 + $0x100] sm:$0xff]
    %v83 = vld [vmem:[#allocation3 + $0x108] sm:$0xff]
    %v84 = vld [vmem:[#allocation3 + $0x110] sm:$0xff]
    %v85 = vld [vmem:[#allocation3 + $0x118] sm:$0xff]
    %v86 = vld [vmem:[#allocation3 + $0x120] sm:$0xff]
    %v87 = vld [vmem:[#allocation3 + $0x128] sm:$0xff]
    %v88 = vld [vmem:[#allocation3 + $0x130] sm:$0xff]
    %v89 = vld [vmem:[#allocation3 + $0x138] sm:$0xff]
    %v90 = vld [vmem:[#allocation3 + $0x140] sm:$0xff]
    %v91 = vld [vmem:[#allocation3 + $0x148] sm:$0xff]
    %v92 = vld [vmem:[#allocation3 + $0x150] sm:$0xff]
    %v93 = vld [vmem:[#allocation3 + $0x158] sm:$0xff]
    %v94 = vld [vmem:[#allocation3 + $0x160] sm:$0xff]
    %v95 = vld [vmem:[#allocation3 + $0x168] sm:$0xff]
    %v96 = vld [vmem:[#allocation3 + $0x170] sm:$0xff]
    %v97 = vld [vmem:[#allocation3 + $0x178] sm:$0xff]
    %v98 = vld [vmem:[#allocation3 + $0x180] sm:$0xff]
    %v99 = vld [vmem:[#allocation3 + $0x188] sm:$0xff]
    %v100 = vld [vmem:[#allocation3 + $0x190] sm:$0xff]
    %v101 = vld [vmem:[#allocation3 + $0x198] sm:$0xff]
    %v102 = vld [vmem:[#allocation3 + $0x1a0] sm:$0xff]
    %v103 = vld [vmem:[#allocation3 + $0x1a8] sm:$0xff]
    %v104 = vld [vmem:[#allocation3 + $0x1b0] sm:$0xff]
    %v105 = vld [vmem:[#allocation3 + $0x1b8] sm:$0xff]
    %v106 = vld [vmem:[#allocation3 + $0x1c0] sm:$0xff]
    %v107 = vld [vmem:[#allocation3 + $0x1c8] sm:$0xff]
    %v108 = vld [vmem:[#allocation3 + $0x1d0] sm:$0xff]
    %v109 = vld [vmem:[#allocation3 + $0x1d8] sm:$0xff]
    %v110 = vld [vmem:[#allocation3 + $0x1e0] sm:$0xff]
    %v111 = vld [vmem:[#allocation3 + $0x1e8] sm:$0xff]
    %v112 = vld [vmem:[#allocation3 + $0x1f0] sm:$0xff]
    %v113 = vld [vmem:[#allocation3 + $0x1f8] sm:$0xff]
    %v114 = vpack.c.bf16 %v54, %v50
    %v115 = vpack.c.bf16 %v55, %v51
    %v116 = vpack.c.bf16 %v56, %v52
    %v117 = vpack.c.bf16 %v57, %v53
    %v118 = vpack.c.bf16 %v62, %v58
    %v119 = vpack.c.bf16 %v63, %v59
    %v120 = vpack.c.bf16 %v64, %v60
    %v121 = vpack.c.bf16 %v65, %v61
    %v122 = vpack.c.bf16 %v70, %v66
    %v123 = vpack.c.bf16 %v71, %v67
    %v124 = vpack.c.bf16 %v72, %v68
    %v125 = vpack.c.bf16 %v73, %v69
    %v126 = vpack.c.bf16 %v78, %v74
    %v127 = vpack.c.bf16 %v79, %v75
    %v128 = vpack.c.bf16 %v80, %v76
    %v129 = vpack.c.bf16 %v81, %v77
    %v130 = vpack.c.bf16 %v86, %v82
    %v131 = vpack.c.bf16 %v87, %v83
    %v132 = vpack.c.bf16 %v88, %v84
    %v133 = vpack.c.bf16 %v89, %v85
    %v134 = vpack.c.bf16 %v94, %v90
    %v135 = vpack.c.bf16 %v95, %v91
    %v136 = vpack.c.bf16 %v96, %v92
    %v137 = vpack.c.bf16 %v97, %v93
    %v138 = vpack.c.bf16 %v102, %v98
    %v139 = vpack.c.bf16 %v103, %v99
    %v140 = vpack.c.bf16 %v104, %v100
    %v141 = vpack.c.bf16 %v105, %v101
    %v142 = vpack.c.bf16 %v110, %v106
    %v143 = vpack.c.bf16 %v111, %v107
    %v144 = vpack.c.bf16 %v112, %v108
    %v145 = vpack.c.bf16 %v113, %v109
    %v146 = vld [vmem:[#allocation6] sm:$0xff]
    %v147 = vld [vmem:[#allocation6 + $0x8] sm:$0xff]
    %v148 = vld [vmem:[#allocation6 + $0x10] sm:$0xff]
    %v149 = vld [vmem:[#allocation6 + $0x18] sm:$0xff]
    %v150 = vld [vmem:[#allocation6 + $0x20] sm:$0xff]
    %v151 = vld [vmem:[#allocation6 + $0x28] sm:$0xff]
    %v152 = vld [vmem:[#allocation6 + $0x30] sm:$0xff]
    %v153 = vld [vmem:[#allocation6 + $0x38] sm:$0xff]
    %v154 = vld [vmem:[#allocation6 + $0x40] sm:$0xff]
    %v155 = vld [vmem:[#allocation6 + $0x48] sm:$0xff]
    %v156 = vld [vmem:[#allocation6 + $0x50] sm:$0xff]
    %v157 = vld [vmem:[#allocation6 + $0x58] sm:$0xff]
    %v158 = vld [vmem:[#allocation6 + $0x60] sm:$0xff]
    %v159 = vld [vmem:[#allocation6 + $0x68] sm:$0xff]
    %v160 = vld [vmem:[#allocation6 + $0x70] sm:$0xff]
    %v161 = vld [vmem:[#allocation6 + $0x78] sm:$0xff]
    %v162 = vld [vmem:[#allocation6 + $0x80] sm:$0xff]
    %v163 = vld [vmem:[#allocation6 + $0x88] sm:$0xff]
    %v164 = vld [vmem:[#allocation6 + $0x90] sm:$0xff]
    %v165 = vld [vmem:[#allocation6 + $0x98] sm:$0xff]
    %v166 = vld [vmem:[#allocation6 + $0xa0] sm:$0xff]
    %v167 = vld [vmem:[#allocation6 + $0xa8] sm:$0xff]
    %v168 = vld [vmem:[#allocation6 + $0xb0] sm:$0xff]
    %v169 = vld [vmem:[#allocation6 + $0xb8] sm:$0xff]
    %v170 = vld [vmem:[#allocation6 + $0xc0] sm:$0xff]
    %v171 = vld [vmem:[#allocation6 + $0xc8] sm:$0xff]
    %v172 = vld [vmem:[#allocation6 + $0xd0] sm:$0xff]
    %v173 = vld [vmem:[#allocation6 + $0xd8] sm:$0xff]
    %v174 = vld [vmem:[#allocation6 + $0xe0] sm:$0xff]
    %v175 = vld [vmem:[#allocation6 + $0xe8] sm:$0xff]
    %v176 = vld [vmem:[#allocation6 + $0xf0] sm:$0xff]
    %v177 = vld [vmem:[#allocation6 + $0xf8] sm:$0xff]
    %v178 = vld [vmem:[#allocation6 + $0x100] sm:$0xff]
    %v179 = vld [vmem:[#allocation6 + $0x108] sm:$0xff]
    %v180 = vld [vmem:[#allocation6 + $0x110] sm:$0xff]
    %v181 = vld [vmem:[#allocation6 + $0x118] sm:$0xff]
    %v182 = vld [vmem:[#allocation6 + $0x120] sm:$0xff]
    %v183 = vld [vmem:[#allocation6 + $0x128] sm:$0xff]
    %v184 = vld [vmem:[#allocation6 + $0x130] sm:$0xff]
    %v185 = vld [vmem:[#allocation6 + $0x138] sm:$0xff]
    %v186 = vld [vmem:[#allocation6 + $0x140] sm:$0xff]
    %v187 = vld [vmem:[#allocation6 + $0x148] sm:$0xff]
    %v188 = vld [vmem:[#allocation6 + $0x150] sm:$0xff]
    %v189 = vld [vmem:[#allocation6 + $0x158] sm:$0xff]
    %v190 = vld [vmem:[#allocation6 + $0x160] sm:$0xff]
    %v191 = vld [vmem:[#allocation6 + $0x168] sm:$0xff]
    %v192 = vld [vmem:[#allocation6 + $0x170] sm:$0xff]
    %v193 = vld [vmem:[#allocation6 + $0x178] sm:$0xff]
    %v194 = vld [vmem:[#allocation6 + $0x180] sm:$0xff]
    %v195 = vld [vmem:[#allocation6 + $0x188] sm:$0xff]
    %v196 = vld [vmem:[#allocation6 + $0x190] sm:$0xff]
    %v197 = vld [vmem:[#allocation6 + $0x198] sm:$0xff]
    %v198 = vld [vmem:[#allocation6 + $0x1a0] sm:$0xff]
    %v199 = vld [vmem:[#allocation6 + $0x1a8] sm:$0xff]
    %v200 = vld [vmem:[#allocation6 + $0x1b0] sm:$0xff]
    %v201 = vld [vmem:[#allocation6 + $0x1b8] sm:$0xff]
    %v202 = vld [vmem:[#allocation6 + $0x1c0] sm:$0xff]
    %v203 = vld [vmem:[#allocation6 + $0x1c8] sm:$0xff]
    %v204 = vld [vmem:[#allocation6 + $0x1d0] sm:$0xff]
    %v205 = vld [vmem:[#allocation6 + $0x1d8] sm:$0xff]
    %v206 = vld [vmem:[#allocation6 + $0x1e0] sm:$0xff]
    %v207 = vld [vmem:[#allocation6 + $0x1e8] sm:$0xff]
    %v208 = vld [vmem:[#allocation6 + $0x1f0] sm:$0xff]
    %v209 = vld [vmem:[#allocation6 + $0x1f8] sm:$0xff]
    %v210 = vld [vmem:[%s2] sm:$0x3]
    %v212 = vlaneseq
    %v213 = vshrl.u32 %v212, 7
    %v214 = vsub.s32 0, %v213
    %v215 = vrot.slane %v210, %v214
    %v216 = vlaneseq
    %v217 = vshrl.u32 %v216, 7
    %v218 = vsub.s32 1, %v217
    %v219 = vrot.slane %v210, %v218
    %v286 = vunpack.c.l.b16 %v146
    %v287 = vunpack.c.h.b16 %v146
    %v288 = vunpack.c.l.b16 %v147
    %v289 = vunpack.c.h.b16 %v147
    %v290 = vunpack.c.l.b16 %v148
    %v291 = vunpack.c.h.b16 %v148
    %v292 = vunpack.c.l.b16 %v149
    %v293 = vunpack.c.h.b16 %v149
    %v294 = vunpack.c.l.b16 %v150
    %v295 = vunpack.c.h.b16 %v150
    %v296 = vunpack.c.l.b16 %v151
    %v297 = vunpack.c.h.b16 %v151
    %v298 = vunpack.c.l.b16 %v152
    %v299 = vunpack.c.h.b16 %v152
    %v300 = vunpack.c.l.b16 %v153
    %v301 = vunpack.c.h.b16 %v153
    %v302 = vunpack.c.l.b16 %v154
    %v303 = vunpack.c.h.b16 %v154
    %v304 = vunpack.c.l.b16 %v155
    %v305 = vunpack.c.h.b16 %v155
    %v306 = vunpack.c.l.b16 %v156
    %v307 = vunpack.c.h.b16 %v156
    %v308 = vunpack.c.l.b16 %v157
    %v309 = vunpack.c.h.b16 %v157
    %v310 = vunpack.c.l.b16 %v158
    %v311 = vunpack.c.h.b16 %v158
    %v312 = vunpack.c.l.b16 %v159
    %v313 = vunpack.c.h.b16 %v159
    %v314 = vunpack.c.l.b16 %v160
    %v315 = vunpack.c.h.b16 %v160
    %v316 = vunpack.c.l.b16 %v161
    %v317 = vunpack.c.h.b16 %v161
    %v318 = vunpack.c.l.b16 %v162
    %v319 = vunpack.c.h.b16 %v162
    %v320 = vunpack.c.l.b16 %v163
    %v321 = vunpack.c.h.b16 %v163
    %v322 = vunpack.c.l.b16 %v164
    %v323 = vunpack.c.h.b16 %v164
    %v324 = vunpack.c.l.b16 %v165
    %v325 = vunpack.c.h.b16 %v165
    %v326 = vunpack.c.l.b16 %v166
    %v327 = vunpack.c.h.b16 %v166
    %v328 = vunpack.c.l.b16 %v167
    %v329 = vunpack.c.h.b16 %v167
    %v330 = vunpack.c.l.b16 %v168
    %v331 = vunpack.c.h.b16 %v168
    %v332 = vunpack.c.l.b16 %v169
    %v333 = vunpack.c.h.b16 %v169
    %v334 = vunpack.c.l.b16 %v170
    %v335 = vunpack.c.h.b16 %v170
    %v336 = vunpack.c.l.b16 %v171
    %v337 = vunpack.c.h.b16 %v171
    %v338 = vunpack.c.l.b16 %v172
    %v339 = vunpack.c.h.b16 %v172
    %v340 = vunpack.c.l.b16 %v173
    %v341 = vunpack.c.h.b16 %v173
    %v342 = vunpack.c.l.b16 %v174
    %v343 = vunpack.c.h.b16 %v174
    %v344 = vunpack.c.l.b16 %v175
    %v345 = vunpack.c.h.b16 %v175
    %v346 = vunpack.c.l.b16 %v176
    %v347 = vunpack.c.h.b16 %v176
    %v348 = vunpack.c.l.b16 %v177
    %v349 = vunpack.c.h.b16 %v177
    %v350 = vunpack.c.l.b16 %v178
    %v351 = vunpack.c.h.b16 %v178
    %v352 = vunpack.c.l.b16 %v179
    %v353 = vunpack.c.h.b16 %v179
    %v354 = vunpack.c.l.b16 %v180
    %v355 = vunpack.c.h.b16 %v180
    %v356 = vunpack.c.l.b16 %v181
    %v357 = vunpack.c.h.b16 %v181
    %v358 = vunpack.c.l.b16 %v182
    %v359 = vunpack.c.h.b16 %v182
    %v360 = vunpack.c.l.b16 %v183
    %v361 = vunpack.c.h.b16 %v183
    %v362 = vunpack.c.l.b16 %v184
    %v363 = vunpack.c.h.b16 %v184
    %v364 = vunpack.c.l.b16 %v185
    %v365 = vunpack.c.h.b16 %v185
    %v366 = vunpack.c.l.b16 %v186
    %v367 = vunpack.c.h.b16 %v186
    %v368 = vunpack.c.l.b16 %v187
    %v369 = vunpack.c.h.b16 %v187
    %v370 = vunpack.c.l.b16 %v188
    %v371 = vunpack.c.h.b16 %v188
    %v372 = vunpack.c.l.b16 %v189
    %v373 = vunpack.c.h.b16 %v189
    %v374 = vunpack.c.l.b16 %v190
    %v375 = vunpack.c.h.b16 %v190
    %v376 = vunpack.c.l.b16 %v191
    %v377 = vunpack.c.h.b16 %v191
    %v378 = vunpack.c.l.b16 %v192
    %v379 = vunpack.c.h.b16 %v192
    %v380 = vunpack.c.l.b16 %v193
    %v381 = vunpack.c.h.b16 %v193
    %v382 = vunpack.c.l.b16 %v194
    %v383 = vunpack.c.h.b16 %v194
    %v384 = vunpack.c.l.b16 %v195
    %v385 = vunpack.c.h.b16 %v195
    %v386 = vunpack.c.l.b16 %v196
    %v387 = vunpack.c.h.b16 %v196
    %v388 = vunpack.c.l.b16 %v197
    %v389 = vunpack.c.h.b16 %v197
    %v390 = vunpack.c.l.b16 %v198
    %v391 = vunpack.c.h.b16 %v198
    %v392 = vunpack.c.l.b16 %v199
    %v393 = vunpack.c.h.b16 %v199
    %v394 = vunpack.c.l.b16 %v200
    %v395 = vunpack.c.h.b16 %v200
    %v396 = vunpack.c.l.b16 %v201
    %v397 = vunpack.c.h.b16 %v201
    %v398 = vunpack.c.l.b16 %v202
    %v399 = vunpack.c.h.b16 %v202
    %v400 = vunpack.c.l.b16 %v203
    %v401 = vunpack.c.h.b16 %v203
    %v402 = vunpack.c.l.b16 %v204
    %v403 = vunpack.c.h.b16 %v204
    %v404 = vunpack.c.l.b16 %v205
    %v405 = vunpack.c.h.b16 %v205
    %v406 = vunpack.c.l.b16 %v206
    %v407 = vunpack.c.h.b16 %v206
    %v408 = vunpack.c.l.b16 %v207
    %v409 = vunpack.c.h.b16 %v207
    %v410 = vunpack.c.l.b16 %v208
    %v411 = vunpack.c.h.b16 %v208
    %v412 = vunpack.c.l.b16 %v209
    %v413 = vunpack.c.h.b16 %v209
    %v414 = vpack.c.b16 %v288, %v286
    %v415 = vpack.c.b16 %v289, %v287
    %v416 = vpack.c.b16 %v292, %v290
    %v417 = vpack.c.b16 %v293, %v291
    %v418 = vpack.c.b16 %v296, %v294
    %v419 = vpack.c.b16 %v297, %v295
    %v420 = vpack.c.b16 %v300, %v298
    %v421 = vpack.c.b16 %v301, %v299
    %v422 = vpack.c.b16 %v304, %v302
    %v423 = vpack.c.b16 %v305, %v303
    %v424 = vpack.c.b16 %v308, %v306
    %v425 = vpack.c.b16 %v309, %v307
    %v426 = vpack.c.b16 %v312, %v310
    %v427 = vpack.c.b16 %v313, %v311
    %v428 = vpack.c.b16 %v316, %v314
    %v429 = vpack.c.b16 %v317, %v315
    %v430 = vpack.c.b16 %v320, %v318
    %v431 = vpack.c.b16 %v321, %v319
    %v432 = vpack.c.b16 %v324, %v322
    %v433 = vpack.c.b16 %v325, %v323
    %v434 = vpack.c.b16 %v328, %v326
    %v435 = vpack.c.b16 %v329, %v327
    %v436 = vpack.c.b16 %v332, %v330
    %v437 = vpack.c.b16 %v333, %v331
    %v438 = vpack.c.b16 %v336, %v334
    %v439 = vpack.c.b16 %v337, %v335
    %v440 = vpack.c.b16 %v340, %v338
    %v441 = vpack.c.b16 %v341, %v339
    %v442 = vpack.c.b16 %v344, %v342
    %v443 = vpack.c.b16 %v345, %v343
    %v444 = vpack.c.b16 %v348, %v346
    %v445 = vpack.c.b16 %v349, %v347
    %v446 = vpack.c.b16 %v352, %v350
    %v447 = vpack.c.b16 %v353, %v351
    %v448 = vpack.c.b16 %v356, %v354
    %v449 = vpack.c.b16 %v357, %v355
    %v450 = vpack.c.b16 %v360, %v358
    %v451 = vpack.c.b16 %v361, %v359
    %v452 = vpack.c.b16 %v364, %v362
    %v453 = vpack.c.b16 %v365, %v363
    %v454 = vpack.c.b16 %v368, %v366
    %v455 = vpack.c.b16 %v369, %v367
    %v456 = vpack.c.b16 %v372, %v370
    %v457 = vpack.c.b16 %v373, %v371
    %v458 = vpack.c.b16 %v376, %v374
    %v459 = vpack.c.b16 %v377, %v375
    %v460 = vpack.c.b16 %v380, %v378
    %v461 = vpack.c.b16 %v381, %v379
    %v462 = vpack.c.b16 %v384, %v382
    %v463 = vpack.c.b16 %v385, %v383
    %v464 = vpack.c.b16 %v388, %v386
    %v465 = vpack.c.b16 %v389, %v387
    %v466 = vpack.c.b16 %v392, %v390
    %v467 = vpack.c.b16 %v393, %v391
    %v468 = vpack.c.b16 %v396, %v394
    %v469 = vpack.c.b16 %v397, %v395
    %v470 = vpack.c.b16 %v400, %v398
    %v471 = vpack.c.b16 %v401, %v399
    %v472 = vpack.c.b16 %v404, %v402
    %v473 = vpack.c.b16 %v405, %v403
    %v474 = vpack.c.b16 %v408, %v406
    %v475 = vpack.c.b16 %v409, %v407
    %v476 = vpack.c.b16 %v412, %v410
    %v477 = vpack.c.b16 %v413, %v411
    %542 = vmatprep.subr.bf16.mxu0 %v429
    %543 = vmatpush1.bf16.msra.mxu0 %v428
    %544 = vmatprep.subr.bf16.mxu0 %v427
    %545 = vmatpush1.bf16.msra.mxu0 %v426
    %546 = vmatprep.subr.bf16.mxu0 %v425
    %547 = vmatpush1.bf16.msra.mxu0 %v424
    %548 = vmatprep.subr.bf16.mxu0 %v423
    %549 = vmatpush1.bf16.msra.mxu0 %v422
    %550 = vmatprep.subr.bf16.mxu0 %v421
    %551 = vmatpush1.bf16.msra.mxu0 %v420
    %552 = vmatprep.subr.bf16.mxu0 %v419
    %553 = vmatpush1.bf16.msra.mxu0 %v418
    %554 = vmatprep.subr.bf16.mxu0 %v417
    %555 = vmatpush1.bf16.msra.mxu0 %v416
    %556 = vmatprep.subr.bf16.mxu0 %v415
    %557 = vmatpush1.bf16.msra.mxu0 %v414
    %558 = vmatprep.subr.bf16.mxu0 %v445
    %559 = vmatpush2.bf16.msra.mxu0 %v444
    %560 = vmatprep.subr.bf16.mxu0 %v443
    %561 = vmatpush2.bf16.msra.mxu0 %v442
    %562 = vmatprep.subr.bf16.mxu0 %v441
    %563 = vmatpush2.bf16.msra.mxu0 %v440
    %564 = vmatprep.subr.bf16.mxu0 %v439
    %565 = vmatpush2.bf16.msra.mxu0 %v438
    %566 = vmatprep.subr.bf16.mxu0 %v437
    %567 = vmatpush2.bf16.msra.mxu0 %v436
    %568 = vmatprep.subr.bf16.mxu0 %v435
    %569 = vmatpush2.bf16.msra.mxu0 %v434
    %570 = vmatprep.subr.bf16.mxu0 %v433
    %571 = vmatpush2.bf16.msra.mxu0 %v432
    %572 = vmatprep.subr.bf16.mxu0 %v431
    %573 = vmatpush2.bf16.msra.mxu0 %v430
    %574 = vmatprep.mubr.bf16.mxu0 %v115
    %575 = vmatmul.mubr.bf16.gmra.mxu0 %v114
    %v576 = vpop.f32.mrf.mxu0
    %v577 = vadd.f32 %v215, %v576
    %v578 = vpop.f32.mrf.mxu0
    %v579 = vadd.f32 %v219, %v578
    %v580 = vpop.f32.mrf.mxu0
    %v581 = vadd.f32 %v215, %v580
    %v582 = vpop.f32.mrf.mxu0
    %v583 = vadd.f32 %v219, %v582
    %584 = vmatprep.mubr.bf16.mxu0 %v119
    %585 = vmatmul.mubr.bf16.gmra.mxu0 %v118
    %v586 = vpop.f32.mrf.mxu0
    %v587 = vadd.f32 %v215, %v586
    %v588 = vpop.f32.mrf.mxu0
    %v589 = vadd.f32 %v219, %v588
    %v590 = vpop.f32.mrf.mxu0
    %v591 = vadd.f32 %v215, %v590
    %v592 = vpop.f32.mrf.mxu0
    %v593 = vadd.f32 %v219, %v592
    %594 = vmatprep.mubr.bf16.mxu0 %v123
    %595 = vmatmul.mubr.bf16.gmra.mxu0 %v122
    %v596 = vpop.f32.mrf.mxu0
    %v597 = vadd.f32 %v215, %v596
    %v598 = vpop.f32.mrf.mxu0
    %v599 = vadd.f32 %v219, %v598
    %v600 = vpop.f32.mrf.mxu0
    %v601 = vadd.f32 %v215, %v600
    %v602 = vpop.f32.mrf.mxu0
    %v603 = vadd.f32 %v219, %v602
    %604 = vmatprep.mubr.bf16.mxu0 %v127
    %605 = vmatmul.mubr.bf16.gmra.mxu0 %v126
    %v606 = vpop.f32.mrf.mxu0
    %v607 = vadd.f32 %v215, %v606
    %v608 = vpop.f32.mrf.mxu0
    %v609 = vadd.f32 %v219, %v608
    %v610 = vpop.f32.mrf.mxu0
    %v611 = vadd.f32 %v215, %v610
    %v612 = vpop.f32.mrf.mxu0
    %v613 = vadd.f32 %v219, %v612
    %614 = vmatprep.mubr.bf16.mxu0 %v131
    %615 = vmatmul.mubr.bf16.gmra.mxu0 %v130
    %v616 = vpop.f32.mrf.mxu0
    %v617 = vadd.f32 %v215, %v616
    %v618 = vpop.f32.mrf.mxu0
    %v619 = vadd.f32 %v219, %v618
    %v620 = vpop.f32.mrf.mxu0
    %v621 = vadd.f32 %v215, %v620
    %v622 = vpop.f32.mrf.mxu0
    %v623 = vadd.f32 %v219, %v622
    %624 = vmatprep.mubr.bf16.mxu0 %v135
    %625 = vmatmul.mubr.bf16.gmra.mxu0 %v134
    %v626 = vpop.f32.mrf.mxu0
    %v627 = vadd.f32 %v215, %v626
    %v628 = vpop.f32.mrf.mxu0
    %v629 = vadd.f32 %v219, %v628
    %v630 = vpop.f32.mrf.mxu0
    %v631 = vadd.f32 %v215, %v630
    %v632 = vpop.f32.mrf.mxu0
    %v633 = vadd.f32 %v219, %v632
    %634 = vmatprep.mubr.bf16.mxu0 %v139
    %635 = vmatmul.mubr.bf16.gmra.mxu0 %v138
    %v636 = vpop.f32.mrf.mxu0
    %v637 = vadd.f32 %v215, %v636
    %v638 = vpop.f32.mrf.mxu0
    %v639 = vadd.f32 %v219, %v638
    %v640 = vpop.f32.mrf.mxu0
    %v641 = vadd.f32 %v215, %v640
    %v642 = vpop.f32.mrf.mxu0
    %v643 = vadd.f32 %v219, %v642
    %644 = vmatprep.mubr.bf16.mxu0 %v143
    %645 = vmatmul.mubr.bf16.gmra.mxu0 %v142
    %v646 = vpop.f32.mrf.mxu0
    %v647 = vadd.f32 %v215, %v646
    %v648 = vpop.f32.mrf.mxu0
    %v649 = vadd.f32 %v219, %v648
    %v650 = vpop.f32.mrf.mxu0
    %v651 = vadd.f32 %v215, %v650
    %v652 = vpop.f32.mrf.mxu0
    %v653 = vadd.f32 %v219, %v652
    %654 = vdwg.mxu0
    %655 = vmatprep.subr.bf16.mxu0 %v461
    %656 = vmatpush1.bf16.msra.mxu0 %v460
    %657 = vmatprep.subr.bf16.mxu0 %v459
    %658 = vmatpush1.bf16.msra.mxu0 %v458
    %659 = vmatprep.subr.bf16.mxu0 %v457
    %660 = vmatpush1.bf16.msra.mxu0 %v456
    %661 = vmatprep.subr.bf16.mxu0 %v455
    %662 = vmatpush1.bf16.msra.mxu0 %v454
    %663 = vmatprep.subr.bf16.mxu0 %v453
    %664 = vmatpush1.bf16.msra.mxu0 %v452
    %665 = vmatprep.subr.bf16.mxu0 %v451
    %666 = vmatpush1.bf16.msra.mxu0 %v450
    %667 = vmatprep.subr.bf16.mxu0 %v449
    %668 = vmatpush1.bf16.msra.mxu0 %v448
    %669 = vmatprep.subr.bf16.mxu0 %v447
    %670 = vmatpush1.bf16.msra.mxu0 %v446
    %671 = vmatprep.subr.bf16.mxu0 %v477
    %672 = vmatpush2.bf16.msra.mxu0 %v476
    %673 = vmatprep.subr.bf16.mxu0 %v475
    %674 = vmatpush2.bf16.msra.mxu0 %v474
    %675 = vmatprep.subr.bf16.mxu0 %v473
    %676 = vmatpush2.bf16.msra.mxu0 %v472
    %677 = vmatprep.subr.bf16.mxu0 %v471
    %678 = vmatpush2.bf16.msra.mxu0 %v470
    %679 = vmatprep.subr.bf16.mxu0 %v469
    %680 = vmatpush2.bf16.msra.mxu0 %v468
    %681 = vmatprep.subr.bf16.mxu0 %v467
    %682 = vmatpush2.bf16.msra.mxu0 %v466
    %683 = vmatprep.subr.bf16.mxu0 %v465
    %684 = vmatpush2.bf16.msra.mxu0 %v464
    %685 = vmatprep.subr.bf16.mxu0 %v463
    %686 = vmatpush2.bf16.msra.mxu0 %v462
    %687 = vmatprep.mubr.bf16.mxu0 %v117
    %688 = vmatmul.mubr.bf16.gmra.mxu0 %v116
    %v689 = vpop.f32.mrf.mxu0
    %v690 = vadd.f32 %v577, %v689
    %v691 = vpop.f32.mrf.mxu0
    %v692 = vadd.f32 %v579, %v691
    %v693 = vpop.f32.mrf.mxu0
    %v694 = vadd.f32 %v581, %v693
    %v695 = vpop.f32.mrf.mxu0
    %v696 = vadd.f32 %v583, %v695
    %697 = vmatprep.mubr.bf16.mxu0 %v121
    %698 = vmatmul.mubr.bf16.gmra.mxu0 %v120
    %v699 = vpop.f32.mrf.mxu0
    %v700 = vadd.f32 %v587, %v699
    %v701 = vpop.f32.mrf.mxu0
    %v702 = vadd.f32 %v589, %v701
    %v703 = vpop.f32.mrf.mxu0
    %v704 = vadd.f32 %v591, %v703
    %v705 = vpop.f32.mrf.mxu0
    %v706 = vadd.f32 %v593, %v705
    %707 = vmatprep.mubr.bf16.mxu0 %v125
    %708 = vmatmul.mubr.bf16.gmra.mxu0 %v124
    %v709 = vpop.f32.mrf.mxu0
    %v710 = vadd.f32 %v597, %v709
    %v711 = vpop.f32.mrf.mxu0
    %v712 = vadd.f32 %v599, %v711
    %v713 = vpop.f32.mrf.mxu0
    %v714 = vadd.f32 %v601, %v713
    %v715 = vpop.f32.mrf.mxu0
    %v716 = vadd.f32 %v603, %v715
    %717 = vmatprep.mubr.bf16.mxu0 %v129
    %718 = vmatmul.mubr.bf16.gmra.mxu0 %v128
    %v719 = vpop.f32.mrf.mxu0
    %v720 = vadd.f32 %v607, %v719
    %v721 = vpop.f32.mrf.mxu0
    %v722 = vadd.f32 %v609, %v721
    %v723 = vpop.f32.mrf.mxu0
    %v724 = vadd.f32 %v611, %v723
    %v725 = vpop.f32.mrf.mxu0
    %v726 = vadd.f32 %v613, %v725
    %727 = vmatprep.mubr.bf16.mxu0 %v133
    %728 = vmatmul.mubr.bf16.gmra.mxu0 %v132
    %v729 = vpop.f32.mrf.mxu0
    %v730 = vadd.f32 %v617, %v729
    %v731 = vpop.f32.mrf.mxu0
    %v732 = vadd.f32 %v619, %v731
    %v733 = vpop.f32.mrf.mxu0
    %v734 = vadd.f32 %v621, %v733
    %v735 = vpop.f32.mrf.mxu0
    %v736 = vadd.f32 %v623, %v735
    %737 = vmatprep.mubr.bf16.mxu0 %v137
    %738 = vmatmul.mubr.bf16.gmra.mxu0 %v136
    %v739 = vpop.f32.mrf.mxu0
    %v740 = vadd.f32 %v627, %v739
    %v741 = vpop.f32.mrf.mxu0
    %v742 = vadd.f32 %v629, %v741
    %v743 = vpop.f32.mrf.mxu0
    %v744 = vadd.f32 %v631, %v743
    %v745 = vpop.f32.mrf.mxu0
    %v746 = vadd.f32 %v633, %v745
    %747 = vmatprep.mubr.bf16.mxu0 %v141
    %748 = vmatmul.mubr.bf16.gmra.mxu0 %v140
    %v749 = vpop.f32.mrf.mxu0
    %v750 = vadd.f32 %v637, %v749
    %v751 = vpop.f32.mrf.mxu0
    %v752 = vadd.f32 %v639, %v751
    %v753 = vpop.f32.mrf.mxu0
    %v754 = vadd.f32 %v641, %v753
    %v755 = vpop.f32.mrf.mxu0
    %v756 = vadd.f32 %v643, %v755
    %757 = vmatprep.mubr.bf16.mxu0 %v145
    %758 = vmatmul.mubr.bf16.gmra.mxu0 %v144
    %v759 = vpop.f32.mrf.mxu0
    %v760 = vadd.f32 %v647, %v759
    %v761 = vpop.f32.mrf.mxu0
    %v762 = vadd.f32 %v649, %v761
    %v763 = vpop.f32.mrf.mxu0
    %v764 = vadd.f32 %v651, %v763
    %v765 = vpop.f32.mrf.mxu0
    %v766 = vadd.f32 %v653, %v765
    %767 = vdwg.mxu0
    %v768 = vtanh.pop %v690
    %v769 = vtanh.pop %v694
    %v770 = vtanh.pop %v700
    %v771 = vtanh.pop %v704
    %v772 = vtanh.pop %v710
    %v773 = vtanh.pop %v714
    %v774 = vtanh.pop %v720
    %v775 = vtanh.pop %v724
    %v776 = vtanh.pop %v730
    %v777 = vtanh.pop %v734
    %v778 = vtanh.pop %v740
    %v779 = vtanh.pop %v744
    %v780 = vtanh.pop %v750
    %v781 = vtanh.pop %v754
    %v782 = vtanh.pop %v760
    %v783 = vtanh.pop %v764
    %v784 = vmul.f32 %v692, 0.5
    %v785 = vmul.f32 %v696, 0.5
    %v786 = vmul.f32 %v702, 0.5
    %v787 = vmul.f32 %v706, 0.5
    %v788 = vmul.f32 %v712, 0.5
    %v789 = vmul.f32 %v716, 0.5
    %v790 = vmul.f32 %v722, 0.5
    %v791 = vmul.f32 %v726, 0.5
    %v792 = vmul.f32 %v732, 0.5
    %v793 = vmul.f32 %v736, 0.5
    %v794 = vmul.f32 %v742, 0.5
    %v795 = vmul.f32 %v746, 0.5
    %v796 = vmul.f32 %v752, 0.5
    %v797 = vmul.f32 %v756, 0.5
    %v798 = vmul.f32 %v762, 0.5
    %v799 = vmul.f32 %v766, 0.5
    %v800 = vtanh.pop %v784
    %v801 = vtanh.pop %v785
    %v802 = vtanh.pop %v786
    %v803 = vtanh.pop %v787
    %v804 = vtanh.pop %v788
    %v805 = vtanh.pop %v789
    %v806 = vtanh.pop %v790
    %v807 = vtanh.pop %v791
    %v808 = vtanh.pop %v792
    %v809 = vtanh.pop %v793
    %v810 = vtanh.pop %v794
    %v811 = vtanh.pop %v795
    %v812 = vtanh.pop %v796
    %v813 = vtanh.pop %v797
    %v814 = vtanh.pop %v798
    %v815 = vtanh.pop %v799
    %v816 = vadd.f32 %v800, 1.0
    %v817 = vadd.f32 %v801, 1.0
    %v818 = vadd.f32 %v802, 1.0
    %v819 = vadd.f32 %v803, 1.0
    %v820 = vadd.f32 %v804, 1.0
    %v821 = vadd.f32 %v805, 1.0
    %v822 = vadd.f32 %v806, 1.0
    %v823 = vadd.f32 %v807, 1.0
    %v824 = vadd.f32 %v808, 1.0
    %v825 = vadd.f32 %v809, 1.0
    %v826 = vadd.f32 %v810, 1.0
    %v827 = vadd.f32 %v811, 1.0
    %v828 = vadd.f32 %v812, 1.0
    %v829 = vadd.f32 %v813, 1.0
    %v830 = vadd.f32 %v814, 1.0
    %v831 = vadd.f32 %v815, 1.0
    %v832 = vmul.f32 %v816, 0.5
    %v833 = vmul.f32 %v817, 0.5
    %v834 = vmul.f32 %v818, 0.5
    %v835 = vmul.f32 %v819, 0.5
    %v836 = vmul.f32 %v820, 0.5
    %v837 = vmul.f32 %v821, 0.5
    %v838 = vmul.f32 %v822, 0.5
    %v839 = vmul.f32 %v823, 0.5
    %v840 = vmul.f32 %v824, 0.5
    %v841 = vmul.f32 %v825, 0.5
    %v842 = vmul.f32 %v826, 0.5
    %v843 = vmul.f32 %v827, 0.5
    %v844 = vmul.f32 %v828, 0.5
    %v845 = vmul.f32 %v829, 0.5
    %v846 = vmul.f32 %v830, 0.5
    %v847 = vmul.f32 %v831, 0.5
    %v848 = vmul.f32 %v768, %v832
    %v849 = vmul.f32 %v769, %v833
    %v850 = vmul.f32 %v770, %v834
    %v851 = vmul.f32 %v771, %v835
    %v852 = vmul.f32 %v772, %v836
    %v853 = vmul.f32 %v773, %v837
    %v854 = vmul.f32 %v774, %v838
    %v855 = vmul.f32 %v775, %v839
    %v856 = vmul.f32 %v776, %v840
    %v857 = vmul.f32 %v777, %v841
    %v858 = vmul.f32 %v778, %v842
    %v859 = vmul.f32 %v779, %v843
    %v860 = vmul.f32 %v780, %v844
    %v861 = vmul.f32 %v781, %v845
    %v862 = vmul.f32 %v782, %v846
    %v863 = vmul.f32 %v783, %v847
    %v864 = vld [vmem:[%s3] sm:$0x1]
    %v866 = vlaneseq
    %v867 = vshrl.u32 %v866, 7
    %v868 = vsub.s32 0, %v867
    %v869 = vrot.slane %v864, %v868
    %v871 = vmul.f32 %v848, %v869
    %v872 = vmul.f32 %v849, %v869
    %v873 = vmul.f32 %v850, %v869
    %v874 = vmul.f32 %v851, %v869
    %v875 = vmul.f32 %v852, %v869
    %v876 = vmul.f32 %v853, %v869
    %v877 = vmul.f32 %v854, %v869
    %v878 = vmul.f32 %v855, %v869
    %v879 = vmul.f32 %v856, %v869
    %v880 = vmul.f32 %v857, %v869
    %v881 = vmul.f32 %v858, %v869
    %v882 = vmul.f32 %v859, %v869
    %v883 = vmul.f32 %v860, %v869
    %v884 = vmul.f32 %v861, %v869
    %v885 = vmul.f32 %v862, %v869
    %v886 = vmul.f32 %v863, %v869
    %887 = vadd.xlane.f32.xlu0 %v871
    %v888 = vpop.xlane.xlu0 %887
    %889 = vadd.xlane.f32.xlu0 %v872
    %v890 = vpop.xlane.xlu0 %889
    %891 = vadd.xlane.f32.xlu0 %v873
    %v892 = vpop.xlane.xlu0 %891
    %893 = vadd.xlane.f32.xlu0 %v874
    %v894 = vpop.xlane.xlu0 %893
    %895 = vadd.xlane.f32.xlu0 %v875
    %v896 = vpop.xlane.xlu0 %895
    %897 = vadd.xlane.f32.xlu0 %v876
    %v898 = vpop.xlane.xlu0 %897
    %899 = vadd.xlane.f32.xlu0 %v877
    %v900 = vpop.xlane.xlu0 %899
    %901 = vadd.xlane.f32.xlu0 %v878
    %v902 = vpop.xlane.xlu0 %901
    %903 = vadd.xlane.f32.xlu0 %v879
    %v904 = vpop.xlane.xlu0 %903
    %905 = vadd.xlane.f32.xlu0 %v880
    %v906 = vpop.xlane.xlu0 %905
    %907 = vadd.xlane.f32.xlu0 %v881
    %v908 = vpop.xlane.xlu0 %907
    %909 = vadd.xlane.f32.xlu0 %v882
    %v910 = vpop.xlane.xlu0 %909
    %911 = vadd.xlane.f32.xlu0 %v883
    %v912 = vpop.xlane.xlu0 %911
    %913 = vadd.xlane.f32.xlu0 %v884
    %v914 = vpop.xlane.xlu0 %913
    %915 = vadd.xlane.f32.xlu0 %v885
    %v916 = vpop.xlane.xlu0 %915
    %917 = vadd.xlane.f32.xlu0 %v886
    %v918 = vpop.xlane.xlu0 %917
    %s919 = sld [smem:[#allocation2]]
    %v920 = vstv %s919
    %v921 = vadd.f32 %v888, %v920
    %v922 = vadd.f32 %v890, %v920
    %v923 = vadd.f32 %v892, %v920
    %v924 = vadd.f32 %v894, %v920
    %v925 = vadd.f32 %v896, %v920
    %v926 = vadd.f32 %v898, %v920
    %v927 = vadd.f32 %v900, %v920
    %v928 = vadd.f32 %v902, %v920
    %v929 = vadd.f32 %v904, %v920
    %v930 = vadd.f32 %v906, %v920
    %v931 = vadd.f32 %v908, %v920
    %v932 = vadd.f32 %v910, %v920
    %v933 = vadd.f32 %v912, %v920
    %v934 = vadd.f32 %v914, %v920
    %v935 = vadd.f32 %v916, %v920
    %v936 = vadd.f32 %v918, %v920
    %s937 = smul.u32 0, 128
    %v938 = vlaneseq
    %v939 = vand.u32 %v938, 127
    %v940 = vstv %s937
    %v941 = vadd.s32 %v940, %v939
    %vm942 = vcmp.lt.s32.totalorder %v941, 8
    %v959 = vlaneseq
    %v960 = vshrl.u32 %v959, 7
    %v961 = vsub.s32 %v939, %v960
    %v962 = vrot.slane %v921, %v961
    %v963 = vadd.s32 %v939, 4294967288
    %v964 = vlaneseq
    %v965 = vshrl.u32 %v964, 7
    %v966 = vsub.s32 %v963, %v965
    %v967 = vrot.slane %v922, %v966
    %vm968 = vcmask 130112
    %v969 = vsel %vm968, %v967, %v962
    %v970 = vadd.s32 %v939, 4294967280
    %v971 = vlaneseq
    %v972 = vshrl.u32 %v971, 7
    %v973 = vsub.s32 %v970, %v972
    %v974 = vrot.slane %v923, %v973
    %vm975 = vcmask 195712
    %v976 = vsel %vm975, %v974, %v969
    %v977 = vadd.s32 %v939, 4294967272
    %v978 = vlaneseq
    %v979 = vshrl.u32 %v978, 7
    %v980 = vsub.s32 %v977, %v979
    %v981 = vrot.slane %v924, %v980
    %vm982 = vcmask 261312
    %v983 = vsel %vm982, %v981, %v976
    %v984 = vadd.s32 %v939, 4294967264
    %v985 = vlaneseq
    %v986 = vshrl.u32 %v985, 7
    %v987 = vsub.s32 %v984, %v986
    %v988 = vrot.slane %v925, %v987
    %vm989 = vcmask 326912
    %v990 = vsel %vm989, %v988, %v983
    %v991 = vadd.s32 %v939, 4294967256
    %v992 = vlaneseq
    %v993 = vshrl.u32 %v992, 7
    %v994 = vsub.s32 %v991, %v993
    %v995 = vrot.slane %v926, %v994
    %vm996 = vcmask 392512
    %v997 = vsel %vm996, %v995, %v990
    %v998 = vadd.s32 %v939, 4294967248
    %v999 = vlaneseq
    %v1000 = vshrl.u32 %v999, 7
    %v1001 = vsub.s32 %v998, %v1000
    %v1002 = vrot.slane %v927, %v1001
    %vm1003 = vcmask 458112
    %v1004 = vsel %vm1003, %v1002, %v997
    %v1005 = vadd.s32 %v939, 4294967240
    %v1006 = vlaneseq
    %v1007 = vshrl.u32 %v1006, 7
    %v1008 = vsub.s32 %v1005, %v1007
    %v1009 = vrot.slane %v928, %v1008
    %vm1010 = vcmask 523712
    %v1011 = vsel %vm1010, %v1009, %v1004
    %v1012 = vadd.s32 %v939, 4294967232
    %v1013 = vlaneseq
    %v1014 = vshrl.u32 %v1013, 7
    %v1015 = vsub.s32 %v1012, %v1014
    %v1016 = vrot.slane %v929, %v1015
    %vm1017 = vcmask 589312
    %v1018 = vsel %vm1017, %v1016, %v1011
    %v1019 = vadd.s32 %v939, 4294967224
    %v1020 = vlaneseq
    %v1021 = vshrl.u32 %v1020, 7
    %v1022 = vsub.s32 %v1019, %v1021
    %v1023 = vrot.slane %v930, %v1022
    %vm1024 = vcmask 654912
    %v1025 = vsel %vm1024, %v1023, %v1018
    %v1026 = vadd.s32 %v939, 4294967216
    %v1027 = vlaneseq
    %v1028 = vshrl.u32 %v1027, 7
    %v1029 = vsub.s32 %v1026, %v1028
    %v1030 = vrot.slane %v931, %v1029
    %vm1031 = vcmask 720512
    %v1032 = vsel %vm1031, %v1030, %v1025
    %v1033 = vadd.s32 %v939, 4294967208
    %v1034 = vlaneseq
    %v1035 = vshrl.u32 %v1034, 7
    %v1036 = vsub.s32 %v1033, %v1035
    %v1037 = vrot.slane %v932, %v1036
    %vm1038 = vcmask 786112
    %v1039 = vsel %vm1038, %v1037, %v1032
    %v1040 = vadd.s32 %v939, 4294967200
    %v1041 = vlaneseq
    %v1042 = vshrl.u32 %v1041, 7
    %v1043 = vsub.s32 %v1040, %v1042
    %v1044 = vrot.slane %v933, %v1043
    %vm1045 = vcmask 851712
    %v1046 = vsel %vm1045, %v1044, %v1039
    %v1047 = vadd.s32 %v939, 4294967192
    %v1048 = vlaneseq
    %v1049 = vshrl.u32 %v1048, 7
    %v1050 = vsub.s32 %v1047, %v1049
    %v1051 = vrot.slane %v934, %v1050
    %vm1052 = vcmask 917312
    %v1053 = vsel %vm1052, %v1051, %v1046
    %v1054 = vadd.s32 %v939, 4294967184
    %v1055 = vlaneseq
    %v1056 = vshrl.u32 %v1055, 7
    %v1057 = vsub.s32 %v1054, %v1056
    %v1058 = vrot.slane %v935, %v1057
    %vm1059 = vcmask 982912
    %v1060 = vsel %vm1059, %v1058, %v1053
    %v1061 = vadd.s32 %v939, 4294967176
    %v1062 = vlaneseq
    %v1063 = vshrl.u32 %v1062, 7
    %v1064 = vsub.s32 %v1061, %v1063
    %v1065 = vrot.slane %v936, %v1064
    %vm1066 = vcmask 1048512
    %v1067 = vsel %vm1066, %v1065, %v1060
    %v1069 = vsel %vm942, %v1067, -1e+30
    %s1070 = sshra.s32 %s937, 7
    %s1071 = sand.u32 %s937, 127
    %s1072 = scalar_lea.vmem [#allocation8], %s1070
    %1073 = vst [vmem:[%s1072] sm:$0x1] %v1069
    %p1074 = scmp.eq.s32.totalorder 0, 0
    // Predicated region
    $region30: #{tpu_custom_call.1} parent=1 // pred_check
      %p1075 = pneg %p1074
    $region31: #{tpu_custom_call.1} parent=1 // pred_check_branch
      %1077 = sbr.rel (%p1075) target = $region33
    $region32: #{tpu_custom_call.1} parent=1 // pred_region
      %v1078 = vld [vmem:[#allocation8] sm:$0x1]
      %vm1079 = vcmask 1040384
      %v1080 = vsel %vm1079, %v1078, -inf
      %1081 = vmax.xlane.f32.xlu0 %v1080
      %v1082 = vpop.xlane.xlu0 %1081
      %v1083 = vsub.f32 %v1078, %v1082
      %v1084 = vmul.f32 %v1083, 1.442695
      %v1085 = vpow.pop %v1084
      %v1086 = vsel %vm1079, %v1085, 0.0
      %1087 = vadd.xlane.f32.xlu0 %v1086
      %v1088 = vpop.xlane.xlu0 %1087
      %v1089 = vrcp.pop %v1088
      %v1090 = vmul.f32 %v1085, %v1089
      %1091 = vst [vmem:[#allocation8] sm:$0x1] %v1090
    $region33: #{tpu_custom_call.1} parent=1 // pred_fallthru
      _
    // Predicated region
    $region34: #{tpu_custom_call.1} parent=1 // pred_check
      _
    $region35: #{tpu_custom_call.1} parent=1 // pred_check_branch
      %1093 = sbr.rel (0) target = $region37
    $region36: #{tpu_custom_call.1} parent=1 // pred_region
      %s1095 = ssub.s32 16, 16
      %1096 = vsyncadd [#allocation5], %s1095
      %s1098 = sshll.u32 [#allocation8], 4
      %s1099 = int_to_ptr.vmem [resolvable:$true] %s1098
      %1101 = dma.vmem_to_hbm [thread:$0]  %s1099, 16, %s5, [#allocation5]
    $region37: #{tpu_custom_call.1} parent=1 // pred_fallthru
      _
    // Predicated region
    $region38: #{tpu_custom_call.1} parent=1 // pred_check
      _
    $region39: #{tpu_custom_call.1} parent=1 // pred_check_branch
      %1103 = sbr.rel (0) target = $region41
    $region40: #{tpu_custom_call.1} parent=1 // pred_region
      %1104 = dma.done [#allocation5], 16
    $region41: #{tpu_custom_call.1} parent=1 // pred_fallthru
      _
    %1105 = vsyncpa [#allocation4], 1
    %1106 = vsyncpa [#allocation7], 1
    %1107 = vsyncpa [#allocation5], 1

</llo_original>
